<compile_context>
chip_gen: v7x
topology: tpu7x:2x2x1
jax: 0.10.0
libtpu: 0.0.40
codegen_flags: <defaults>
</compile_context>

<pallas_src>
import functools
import math

import jax
import jax.numpy as jnp
from jax.experimental import pallas as pl
from jax.experimental.pallas import tpu as pltpu


# ----------------------------------------------------------------------------
# Small capability helpers (cached)
# ----------------------------------------------------------------------------
_VMEM_LIMIT = None
_BUFFERED_OK = None


def _vmem_limit_bytes():
    """~3/4 of physical VMEM, capped at 100 MiB (v5e/v6e: 96 MiB, v7x: 48 MiB)."""
    global _VMEM_LIMIT
    if _VMEM_LIMIT is None:
        try:
            cap = int(pltpu.get_tpu_info().vmem_capacity_bytes)
        except Exception:
            cap = 64 * 1024 * 1024
        _VMEM_LIMIT = int(min(cap * 3 // 4, 100 * 1024 * 1024))
    return _VMEM_LIMIT


def _probe_buffered_kernel(x_ref, o_ref):
    o_ref[...] = x_ref[...] + 1.0


def _probe_buffered():
    """Probe once whether pipeline_mode=pl.Buffered(1) is supported on this JAX/TPU."""
    global _BUFFERED_OK
    if _BUFFERED_OK is not None:
        return _BUFFERED_OK
    try:
        spec = pl.BlockSpec((8, 128), lambda i: (0, 0),
                            pipeline_mode=pl.Buffered(buffer_count=1))
        out = pl.pallas_call(
            _probe_buffered_kernel,
            out_shape=jax.ShapeDtypeStruct((16, 128), jnp.float32),
            grid=(2,),
            in_specs=[spec],
            out_specs=pl.BlockSpec((8, 128), lambda i: (i, 0)),
        )(jnp.zeros((8, 128), jnp.float32))
        jax.block_until_ready(out)
        _BUFFERED_OK = True
    except Exception:
        _BUFFERED_OK = False
    return _BUFFERED_OK


def _weight_spec(shape, index_map):
    """BlockSpec for grid-invariant (resident) operands: single-buffered when available."""
    if _probe_buffered():
        return pl.BlockSpec(shape, index_map, pipeline_mode=pl.Buffered(buffer_count=1))
    return pl.BlockSpec(shape, index_map)


def _compiler_params():
    return pltpu.CompilerParams(
        dimension_semantics=("parallel", "parallel"),
        vmem_limit_bytes=_vmem_limit_bytes())


# ----------------------------------------------------------------------------
# Pallas kernels
# ----------------------------------------------------------------------------
def _qkv_kernel(x_ref, wqkv_ref, bqkv_ref, q_ref, k_ref, v_ref, *, num_heads, head_dim):
    """One fused (ts,H)@(H,3H) projection, head-split in-kernel to (NH, ts, hd)."""
    H = num_heads * head_dim
    x = x_ref[0].astype(jnp.bfloat16)                                   # (TS, H)
    qkv = jnp.dot(x, wqkv_ref[...], preferred_element_type=jnp.float32) + bqkv_ref[...]
    qkv = qkv.astype(jnp.bfloat16)                                      # (TS, 3H)
    for h in range(num_heads):                                          # static lane slices
        q_ref[0, h] = qkv[:, h * head_dim:(h + 1) * head_dim]
        k_ref[0, h] = qkv[:, H + h * head_dim:H + (h + 1) * head_dim]
        v_ref[0, h] = qkv[:, 2 * H + h * head_dim:2 * H + (h + 1) * head_dim]


def _attn_kernel(q_ref, k_ref, v_ref, bias_ref, res_ref, wo_ref, bo_ref, g_ref, beta_ref,
                 o_ref, ctx_ref, *, num_heads, head_dim, eps):
    """Biased attention + softmax + context + single output dense + residual + LayerNorm."""
    q = q_ref[0]                                                        # (NH, TQ, hd) bf16
    k = k_ref[0]                                                        # (NH, S,  hd) bf16
    v = v_ref[0]                                                        # (NH, S,  hd) bf16
    scale = 1.0 / math.sqrt(head_dim)

    # Head-batched score matmul; bias (incl. additive attention mask) added in f32.
    s = jnp.einsum("hqd,hkd->hqk", q, k, preferred_element_type=jnp.float32)
    s = s * scale + bias_ref[0].astype(jnp.float32)

    # Softmax in f32 (exact reciprocal).
    m = jnp.max(s, axis=-1, keepdims=True)
    p = jnp.exp(s - m)
    p = p * pl.reciprocal(jnp.sum(p, axis=-1, keepdims=True), approx=False)

    ctx = jnp.einsum("hqk,hkd->hqd", p.astype(jnp.bfloat16), v,
                     preferred_element_type=jnp.float32)                # (NH, TQ, hd) f32

    # Re-layout (NH, TQ, hd) -> (TQ, NH*hd) via static lane-slice stores into a small
    # bf16 scratch (VPU/vst only; MXU idle), then ONE K=H output-projection matmul.
    for h in range(num_heads):
        ctx_ref[:, h * head_dim:(h + 1) * head_dim] = ctx[h].astype(jnp.bfloat16)
    y = (res_ref[0].astype(jnp.float32) + bo_ref[...]
         + jnp.dot(ctx_ref[...], wo_ref[...], preferred_element_type=jnp.float32))

    # Two-pass LayerNorm (no E[y^2]-mu^2 cancellation).
    mu = jnp.mean(y, axis=-1, keepdims=True)
    var = jnp.mean((y - mu) * (y - mu), axis=-1, keepdims=True)
    o_ref[0] = (((y - mu) * jax.lax.rsqrt(var + eps)) * g_ref[...]
                + beta_ref[...]).astype(o_ref.dtype)


def _ffn_kernel(x_ref, w1_ref, b1_ref, w2_ref, b2_ref, g_ref, beta_ref, o_ref, *, eps):
    """y = LayerNorm(gelu(x @ W1 + b1) @ W2 + b2 + x) for one (batch, seq-tile) block."""
    xb = x_ref[0].astype(jnp.bfloat16)                                  # (TS, H)
    h = jnp.dot(xb, w1_ref[...], preferred_element_type=jnp.float32) + b1_ref[...]
    h = jax.nn.gelu(h, approximate=False)                               # exact erf GELU (BERT)
    y = (jnp.dot(h.astype(jnp.bfloat16), w2_ref[...], preferred_element_type=jnp.float32)
         + b2_ref[...] + xb.astype(jnp.float32))
    mu = jnp.mean(y, axis=-1, keepdims=True)
    var = jnp.mean((y - mu) * (y - mu), axis=-1, keepdims=True)
    o_ref[0] = (((y - mu) * jax.lax.rsqrt(var + eps)) * g_ref[...]
                + beta_ref[...]).astype(o_ref.dtype)


# ----------------------------------------------------------------------------
# pallas_call wrappers
# ----------------------------------------------------------------------------
def _seq_tile(S, max_tile=256):
    """Largest seq tile <= max_tile that divides S (multiple of 8 when tiling)."""
    if S <= max_tile:
        return S
    t = (max_tile // 8) * 8
    while t >= 8:
        if S % t == 0:
            return t
        t -= 8
    return S


def _qkv_call(x, wqkv, bqkv, num_heads, head_dim, ts):
    B, S, H = x.shape
    grid = (B, S // ts)
    kernel = functools.partial(_qkv_kernel, num_heads=num_heads, head_dim=head_dim)
    out = jax.ShapeDtypeStruct((B, num_heads, S, head_dim), jnp.bfloat16)
    cost = pl.CostEstimate(
        flops=int(6 * B * S * H * H),
        transcendentals=0,
        bytes_accessed=int(2 * B * S * H + 2 * 3 * H * H + 3 * 2 * B * S * H),
    )
    return pl.pallas_call(
        kernel,
        out_shape=(out, out, out),
        grid=grid,
        in_specs=[
            pl.BlockSpec((1, ts, H), lambda b, t: (b, t, 0)),
            _weight_spec((H, 3 * H), lambda b, t: (0, 0)),      # fused Wq|Wk|Wv, resident
            _weight_spec((1, 3 * H), lambda b, t: (0, 0)),      # fused bias, resident
        ],
        out_specs=(pl.BlockSpec((1, num_heads, ts, head_dim), lambda b, t: (b, 0, t, 0)),) * 3,
        compiler_params=_compiler_params(),
        cost_estimate=cost,
    )(x, wqkv, bqkv)


def _attention_call(qh, kh, vh, bias, x_res, wo, bo, g, beta, cfg, tq):
    B, NH, S, hd = qh.shape
    H = x_res.shape[-1]
    grid = (B, S // tq)
    kernel = functools.partial(_attn_kernel, num_heads=NH, head_dim=hd, eps=cfg["eps"])
    cost = pl.CostEstimate(
        flops=int(4 * B * NH * S * S * hd + 2 * B * S * H * H),
        transcendentals=int(B * NH * S * S),
        bytes_accessed=int(3 * 2 * B * NH * S * hd + 2 * B * NH * S * S
                           + 2 * 2 * B * S * H + 2 * H * H),
    )
    return pl.pallas_call(
        kernel,
        out_shape=jax.ShapeDtypeStruct((B, S, H), jnp.bfloat16),
        grid=grid,
        in_specs=[
            pl.BlockSpec((1, NH, tq, hd), lambda b, t: (b, 0, t, 0)),   # Q (q-tile)
            pl.BlockSpec((1, NH, S, hd), lambda b, t: (b, 0, 0, 0)),    # K (full seq)
            pl.BlockSpec((1, NH, S, hd), lambda b, t: (b, 0, 0, 0)),    # V (full seq)
            pl.BlockSpec((1, NH, tq, S), lambda b, t: (b, 0, t, 0)),    # bias (bf16) per q-tile
            pl.BlockSpec((1, tq, H), lambda b, t: (b, t, 0)),           # residual (bf16)
            _weight_spec((H, H), lambda b, t: (0, 0)),                  # Wo, resident
            _weight_spec((1, H), lambda b, t: (0, 0)),                  # bo
            _weight_spec((1, H), lambda b, t: (0, 0)),                  # LN gamma
            _weight_spec((1, H), lambda b, t: (0, 0)),                  # LN beta
        ],
        out_specs=pl.BlockSpec((1, tq, H), lambda b, t: (b, t, 0)),
        scratch_shapes=[pltpu.VMEM((tq, H), jnp.bfloat16)],             # ctx relayout buffer
        compiler_params=_compiler_params(),
        cost_estimate=cost,
    )(qh, kh, vh, bias, x_res, wo, bo, g, beta)


def _ffn_call(x, w1, b1, w2, b2, g, beta, cfg, ts):
    B, S, H = x.shape
    I = w1.shape[1]
    grid = (B, S // ts)
    kernel = functools.partial(_ffn_kernel, eps=cfg["eps"])
    cost = pl.CostEstimate(
        flops=int(4 * B * S * H * I),
        transcendentals=int(B * S * I),
        bytes_accessed=int(2 * 2 * B * S * H + 2 * 2 * H * I),
    )
    return pl.pallas_call(
        kernel,
        out_shape=jax.ShapeDtypeStruct((B, S, H), jnp.bfloat16),
        grid=grid,
        in_specs=[
            pl.BlockSpec((1, ts, H), lambda b, t: (b, t, 0)),
            _weight_spec((H, I), lambda b, t: (0, 0)),
            _weight_spec((1, I), lambda b, t: (0, 0)),
            _weight_spec((I, H), lambda b, t: (0, 0)),
            _weight_spec((1, H), lambda b, t: (0, 0)),
            _weight_spec((1, H), lambda b, t: (0, 0)),
            _weight_spec((1, H), lambda b, t: (0, 0)),
        ],
        out_specs=pl.BlockSpec((1, ts, H), lambda b, t: (b, t, 0)),
        compiler_params=_compiler_params(),
        cost_estimate=cost,
    )(x, w1, b1, w2, b2, g, beta)


# ----------------------------------------------------------------------------
# Relative-position bias pre-computation (plain JAX glue — computed once, shared
# by every layer).  Bucket->head lookup is a gather (== one_hot @ W).
# ----------------------------------------------------------------------------
def relative_position_bucket(relative_position, num_buckets, max_distance):
    # bidirectional=True variant (as used by LayoutLMv2).
    ret = jnp.zeros_like(relative_position)
    num_buckets = num_buckets // 2
    ret = ret + (relative_position > 0).astype(jnp.int32) * num_buckets
    n = jnp.abs(relative_position)
    max_exact = num_buckets // 2
    is_small = n < max_exact
    n_safe = jnp.maximum(n, 1).astype(jnp.float32)
    val_if_large = max_exact + (
        jnp.log(n_safe / max_exact) / math.log(max_distance / max_exact)
        * (num_buckets - max_exact)
    ).astype(jnp.int32)
    val_if_large = jnp.minimum(val_if_large, num_buckets - 1)
    return ret + jnp.where(is_small, n, val_if_large)


def _calc_1d_pos_bias(position_ids, w_rel, cfg):
    rel_pos_mat = position_ids[:, None, :] - position_ids[:, :, None]
    rel_pos = relative_position_bucket(rel_pos_mat, cfg["rel_pos_bins"], cfg["max_rel_pos"])
    bias = jnp.take(w_rel, rel_pos, axis=0)                    # (B, S, S, NH) gather
    return jnp.transpose(bias, (0, 3, 1, 2))                   # (B, NH, S, S)


def _calc_2d_pos_bias(bbox, w_relx, w_rely, cfg):
    coord_x = bbox[:, :, 0]
    coord_y = bbox[:, :, 3]
    rel_x_mat = coord_x[:, None, :] - coord_x[:, :, None]
    rel_y_mat = coord_y[:, None, :] - coord_y[:, :, None]
    rel_x = relative_position_bucket(rel_x_mat, cfg["rel_2d_pos_bins"], cfg["max_rel_2d_pos"])
    rel_y = relative_position_bucket(rel_y_mat, cfg["rel_2d_pos_bins"], cfg["max_rel_2d_pos"])
    bx = jnp.take(w_relx, rel_x, axis=0)
    by = jnp.take(w_rely, rel_y, axis=0)
    return jnp.transpose(bx, (0, 3, 1, 2)) + jnp.transpose(by, (0, 3, 1, 2))


# ----------------------------------------------------------------------------
# One-time parameter preparation (bf16 cast, QKV fusion) — NOT per forward layer.
# ----------------------------------------------------------------------------
def prepare_kernel_params(params, cfg):
    kp = {"layers": []}
    for lp in params["layers"]:
        kp["layers"].append(dict(
            wqkv=jnp.concatenate([lp["wq"], lp["wk"], lp["wv"]], axis=1).astype(jnp.bfloat16),
            bqkv=jnp.concatenate([lp["bq"], lp["bk"], lp["bv"]], axis=1),    # (1, 3H) f32
            wo=lp["wo"].astype(jnp.bfloat16), bo=lp["bo"],
            g1=lp["g1"], be1=lp["be1"],
            w1=lp["w1"].astype(jnp.bfloat16), b1=lp["b1"],
            w2=lp["w2"].astype(jnp.bfloat16), b2=lp["b2"],
            g2=lp["g2"], be2=lp["be2"],
        ))
    if cfg["has_relation_attention_bias"]:
        kp["rel_pos_w"] = params["rel_pos_w"]
    if cfg["has_spatial_attention_bias"]:
        kp["rel_x_w"] = params["rel_x_w"]
        kp["rel_y_w"] = params["rel_y_w"]
    return kp


# ----------------------------------------------------------------------------
# Encoder forward
# ----------------------------------------------------------------------------
def layoutlmv2_encoder_forward(kparams, hidden_states, ext_mask, bbox, position_ids, cfg):
    B, S, H = hidden_states.shape
    NH, hd = cfg["num_heads"], cfg["head_dim"]

    # Shared attention bias, built in f32 then streamed as bf16 (mask -10000 -> ~-9984,
    # only used for masking); added to f32 scores inside the kernel.
    bias = jnp.zeros((B, NH, S, S), jnp.float32) + ext_mask[:, :, None, :]
    if cfg["has_relation_attention_bias"]:
        bias = bias + _calc_1d_pos_bias(position_ids, kparams["rel_pos_w"], cfg)
    if cfg["has_spatial_attention_bias"]:
        bias = bias + _calc_2d_pos_bias(bbox, kparams["rel_x_w"], kparams["rel_y_w"], cfg)
    bias = bias.astype(jnp.bfloat16)

    ts = _seq_tile(S, 256)
    x = hidden_states.astype(jnp.bfloat16)                      # bf16 residual stream
    for lp in kparams["layers"]:
        qh, kh, vh = _qkv_call(x, lp["wqkv"], lp["bqkv"], NH, hd, ts)
        attn_out = _attention_call(qh, kh, vh, bias, x, lp["wo"],
                                   lp["bo"], lp["g1"], lp["be1"], cfg, ts)
        x = _ffn_call(attn_out, lp["w1"], lp["b1"], lp["w2"], lp["b2"],
                      lp["g2"], lp["be2"], cfg, ts)
    return x


# ----------------------------------------------------------------------------
# Pure-JAX f32 reference (correctness check)
# ----------------------------------------------------------------------------
def _ref_forward(params, hidden_states, ext_mask, bbox, position_ids, cfg):
    B, S, H = hidden_states.shape
    NH, hd, eps = cfg["num_heads"], cfg["head_dim"], cfg["eps"]
    bias = jnp.zeros((B, NH, S, S), jnp.float32)
    if cfg["has_relation_attention_bias"]:
        bias = bias + _calc_1d_pos_bias(position_ids, params["rel_pos_w"], cfg)
    if cfg["has_spatial_attention_bias"]:
        bias = bias + _calc_2d_pos_bias(bbox, params["rel_x_w"], params["rel_y_w"], cfg)

    def ln(v, g, b):
        mu = v.mean(-1, keepdims=True)
        var = ((v - mu) ** 2).mean(-1, keepdims=True)
        return (v - mu) * jax.lax.rsqrt(var + eps) * g + b

    x = hidden_states
    for lp in params["layers"]:
        q = (x @ lp["wq"] + lp["bq"]).reshape(B, S, NH, hd).transpose(0, 2, 1, 3)
        k = (x @ lp["wk"] + lp["bk"]).reshape(B, S, NH, hd).transpose(0, 2, 1, 3)
        v = (x @ lp["wv"] + lp["bv"]).reshape(B, S, NH, hd).transpose(0, 2, 1, 3)
        scores = jnp.einsum("bhqd,bhkd->bhqk", q, k) / math.sqrt(hd)
        scores = scores + bias + ext_mask[:, :, None, :]
        probs = jax.nn.softmax(scores, axis=-1)
        ctx = jnp.einsum("bhqk,bhkd->bhqd", probs, v).transpose(0, 2, 1, 3).reshape(B, S, H)
        attn_out = ln(ctx @ lp["wo"] + lp["bo"] + x, lp["g1"], lp["be1"])
        mid = jax.nn.gelu(attn_out @ lp["w1"] + lp["b1"], approximate=False)
        x = ln(mid @ lp["w2"] + lp["b2"] + attn_out, lp["g2"], lp["be2"])
    return x


# ----------------------------------------------------------------------------
# Deterministic parameter init (synthetic, no checkpoint loading)
# ----------------------------------------------------------------------------
def _init_linear(key, fan_in, fan_out):
    kw, kb = jax.random.split(key)
    w = jax.random.normal(kw, (fan_in, fan_out), jnp.float32) * 0.02
    b = jax.random.normal(kb, (1, fan_out), jnp.float32) * 0.02
    return w, b


def init_params(key, cfg):
    H, I, NH = cfg["hidden"], cfg["intermediate"], cfg["num_heads"]
    layers = []
    for _ in range(cfg["num_layers"]):
        keys = jax.random.split(key, 7)
        key = keys[0]
        wq, bq = _init_linear(keys[1], H, H)
        wk, bk = _init_linear(keys[2], H, H)
        wv, bv = _init_linear(keys[3], H, H)
        wo, bo = _init_linear(keys[4], H, H)
        w1, b1 = _init_linear(keys[5], H, I)
        w2, b2 = _init_linear(keys[6], I, H)
        layers.append(dict(
            wq=wq, bq=bq, wk=wk, bk=bk, wv=wv, bv=bv, wo=wo, bo=bo,
            w1=w1, b1=b1, w2=w2, b2=b2,
            g1=jnp.ones((1, H), jnp.float32), be1=jnp.zeros((1, H), jnp.float32),
            g2=jnp.ones((1, H), jnp.float32), be2=jnp.zeros((1, H), jnp.float32),
        ))
    k1, k2, k3 = jax.random.split(key, 3)
    params = {"layers": layers}
    # stored as (bins, num_heads) == PyTorch Linear weight transposed
    params["rel_pos_w"] = jax.random.normal(k1, (cfg["rel_pos_bins"], NH), jnp.float32) * 0.02
    params["rel_x_w"] = jax.random.normal(k2, (cfg["rel_2d_pos_bins"], NH), jnp.float32) * 0.02
    params["rel_y_w"] = jax.random.normal(k3, (cfg["rel_2d_pos_bins"], NH), jnp.float32) * 0.02
    return params


# ----------------------------------------------------------------------------
if __name__ == "__main__":
    # Toy shapes: correctness smoke test only (real LayoutLMv2: S=512, H=768, I=3072, NH=12).
    cfg = dict(
        hidden=32, intermediate=64, num_heads=4, head_dim=8, num_layers=2,
        rel_pos_bins=32, max_rel_pos=128, rel_2d_pos_bins=64, max_rel_2d_pos=256,
        has_relation_attention_bias=True, has_spatial_attention_bias=True,
        eps=1e-12,
    )
    B, S, H = 2, 8, cfg["hidden"]

    key = jax.random.PRNGKey(0)
    kp, kx, kbb = jax.random.split(key, 3)
    params = init_params(kp, cfg)
    kparams = prepare_kernel_params(params, cfg)   # one-time bf16 cast + QKV fuse

    hidden_states = jax.random.normal(kx, (B, S, H), jnp.float32)
    position_ids = jnp.tile(jnp.arange(S, dtype=jnp.int32)[None, :], (B, 1))
    bbox = jax.random.randint(kbb, (B, S, 4), 0, 1000, dtype=jnp.int32)
    # last two tokens of batch 1 padded out; additive mask = (1 - m) * -10000
    pad_mask = jnp.ones((B, S), jnp.float32).at[1, -2:].set(0.0)
    ext_mask = ((1.0 - pad_mask) * -10000.0)[:, None, :]          # (B, 1, S)

    out = layoutlmv2_encoder_forward(kparams, hidden_states, ext_mask, bbox, position_ids, cfg)
    out = jax.block_until_ready(out)

    ref = jax.block_until_ready(
        _ref_forward(params, hidden_states, ext_mask, bbox, position_ids, cfg))
    assert out.shape == (B, S, H)
    assert jnp.allclose(out.astype(jnp.float32), ref, atol=5e-2, rtol=5e-2), \
        "mismatch vs. JAX reference"

    print("KERNEL_OK")
</pallas_src>

<mosaic_0001>
module attributes {stable_mosaic.version = 11 : i64} {
  func.func @_probe_buffered_kernel(%arg0: i32, %arg1: memref<8x128xf32, #tpu.memory_space<vmem>>, %arg2: memref<8x128xf32, #tpu.memory_space<vmem>>) attributes {dimension_semantics = [#tpu.dimension_semantics<arbitrary>], iteration_bounds = array<i64: 2>, scalar_prefetch = 0 : i64, scratch_operands = 0 : i64, tpu.core_type = #tpu.core_type<tc>, window_params = [{pipeline_mode = #tpu.pipeline_mode<synchronous>, transform_indices = @transform_0, window_bounds = array<i64: 8, 128>}, {transform_indices = @transform_1, window_bounds = array<i64: 8, 128>}]} {
    %c0 = arith.constant 0 : index
    %c0_0 = arith.constant 0 : index
    %0 = vector.load %arg1[%c0, %c0_0] : memref<8x128xf32, #tpu.memory_space<vmem>>, vector<8x128xf32>
    %cst = arith.constant 1.000000e+00 : f32
    %1 = vector.broadcast %cst : f32 to vector<8x128xf32>
    %2 = arith.addf %0, %1 : vector<8x128xf32>
    %c0_1 = arith.constant 0 : index
    %c0_2 = arith.constant 0 : index
    %3 = vector.load %arg2[%c0_1, %c0_2] : memref<8x128xf32, #tpu.memory_space<vmem>>, vector<8x128xf32>
    tpu.vector_store %arg2[%c0_1, %c0_2], %2 {strides = array<i32>} : memref<8x128xf32, #tpu.memory_space<vmem>>, vector<8x128xf32>,
    return
  }
  func.func @transform_0(%arg0: i32) -> (i32, i32) {
    %c0_i32 = arith.constant 0 : i32
    %c0_i32_0 = arith.constant 0 : i32
    %c0_i32_1 = arith.constant 0 : i32
    return %c0_i32, %c0_i32_0 : i32, i32
  }
  func.func @transform_1(%arg0: i32) -> (i32, i32) {
    %c0_i32 = arith.constant 0 : i32
    %c0_i32_0 = arith.constant 0 : i32
    return %arg0, %c0_i32 : i32, i32
  }
}

module attributes {stable_mosaic.version = 11 : i64} {
  func.func @_qkv_kernel(%arg0: i32, %arg1: i32, %arg2: memref<1x8x32xbf16, #tpu.memory_space<vmem>>, %arg3: memref<32x96xbf16, #tpu.memory_space<vmem>>, %arg4: memref<1x96xf32, #tpu.memory_space<vmem>>, %arg5: memref<1x4x8x8xbf16, #tpu.memory_space<vmem>>, %arg6: memref<1x4x8x8xbf16, #tpu.memory_space<vmem>>, %arg7: memref<1x4x8x8xbf16, #tpu.memory_space<vmem>>) attributes {dimension_semantics = [#tpu.dimension_semantics<parallel>, #tpu.dimension_semantics<parallel>], iteration_bounds = array<i64: 2, 1>, scalar_prefetch = 0 : i64, scratch_operands = 0 : i64, tpu.core_type = #tpu.core_type<tc>, window_params = [{transform_indices = @transform_0, window_bounds = array<i64: 1, 8, 32>}, {pipeline_mode = #tpu.pipeline_mode<synchronous>, transform_indices = @transform_1, window_bounds = array<i64: 32, 96>}, {pipeline_mode = #tpu.pipeline_mode<synchronous>, transform_indices = @transform_2, window_bounds = array<i64: 1, 96>}, {transform_indices = @transform_3, window_bounds = array<i64: 1, 4, 8, 8>}, {transform_indices = @transform_4, window_bounds = array<i64: 1, 4, 8, 8>}, {transform_indices = @transform_5, window_bounds = array<i64: 1, 4, 8, 8>}]} {
    %c0 = arith.constant 0 : index
    %c0_0 = arith.constant 0 : index
    %c0_1 = arith.constant 0 : index
    %0 = vector.load %arg2[%c0, %c0_0, %c0_1] : memref<1x8x32xbf16, #tpu.memory_space<vmem>>, vector<1x8x32xbf16>
    %1 = vector.shape_cast %0 : vector<1x8x32xbf16> to vector<8x32xbf16>
    %c0_2 = arith.constant 0 : index
    %c0_3 = arith.constant 0 : index
    %2 = vector.load %arg3[%c0_2, %c0_3] : memref<32x96xbf16, #tpu.memory_space<vmem>>, vector<32x96xbf16>
    %cst = arith.constant dense<0.000000e+00> : vector<8x96xf32>
    %3 = tpu.matmul %1, %2, %cst {dimension_numbers = #tpu.dot_dimension_numbers<[1], [0], [0], [1], [0, 0, 1, 1], [], []>} : vector<8x32xbf16>, vector<32x96xbf16>, vector<8x96xf32> -> vector<8x96xf32>
    %c0_4 = arith.constant 0 : index
    %c0_5 = arith.constant 0 : index
    %4 = vector.load %arg4[%c0_4, %c0_5] : memref<1x96xf32, #tpu.memory_space<vmem>>, vector<1x96xf32>
    %5 = vector.broadcast %4 : vector<1x96xf32> to vector<8x96xf32>
    %6 = arith.addf %3, %5 : vector<8x96xf32>
    %7 = arith.truncf %6 : vector<8x96xf32> to vector<8x96xbf16>
    %8 = vector.extract_strided_slice %7 {offsets = [0, 0], sizes = [8, 8], strides = [1, 1]} : vector<8x96xbf16> to vector<8x8xbf16>
    %c0_6 = arith.constant 0 : index
    %c0_7 = arith.constant 0 : index
    %c0_8 = arith.constant 0 : index
    %c0_9 = arith.constant 0 : index
    %9 = vector.load %arg5[%c0_6, %c0_7, %c0_8, %c0_9] : memref<1x4x8x8xbf16, #tpu.memory_space<vmem>>, vector<1x1x8x8xbf16>
    %10 = vector.shape_cast %9 : vector<1x1x8x8xbf16> to vector<8x8xbf16>
    %11 = vector.shape_cast %8 : vector<8x8xbf16> to vector<1x1x8x8xbf16>
    tpu.vector_store %arg5[%c0_6, %c0_7, %c0_8, %c0_9], %11 {strides = array<i32>} : memref<1x4x8x8xbf16, #tpu.memory_space<vmem>>, vector<1x1x8x8xbf16>,
    %12 = vector.extract_strided_slice %7 {offsets = [0, 32], sizes = [8, 8], strides = [1, 1]} : vector<8x96xbf16> to vector<8x8xbf16>
    %c0_10 = arith.constant 0 : index
    %c0_11 = arith.constant 0 : index
    %c0_12 = arith.constant 0 : index
    %c0_13 = arith.constant 0 : index
    %13 = vector.load %arg6[%c0_10, %c0_11, %c0_12, %c0_13] : memref<1x4x8x8xbf16, #tpu.memory_space<vmem>>, vector<1x1x8x8xbf16>
    %14 = vector.shape_cast %13 : vector<1x1x8x8xbf16> to vector<8x8xbf16>
    %15 = vector.shape_cast %12 : vector<8x8xbf16> to vector<1x1x8x8xbf16>
    tpu.vector_store %arg6[%c0_10, %c0_11, %c0_12, %c0_13], %15 {strides = array<i32>} : memref<1x4x8x8xbf16, #tpu.memory_space<vmem>>, vector<1x1x8x8xbf16>,
    %16 = vector.extract_strided_slice %7 {offsets = [0, 64], sizes = [8, 8], strides = [1, 1]} : vector<8x96xbf16> to vector<8x8xbf16>
    %c0_14 = arith.constant 0 : index
    %c0_15 = arith.constant 0 : index
    %c0_16 = arith.constant 0 : index
    %c0_17 = arith.constant 0 : index
    %17 = vector.load %arg7[%c0_14, %c0_15, %c0_16, %c0_17] : memref<1x4x8x8xbf16, #tpu.memory_space<vmem>>, vector<1x1x8x8xbf16>
    %18 = vector.shape_cast %17 : vector<1x1x8x8xbf16> to vector<8x8xbf16>
    %19 = vector.shape_cast %16 : vector<8x8xbf16> to vector<1x1x8x8xbf16>
    tpu.vector_store %arg7[%c0_14, %c0_15, %c0_16, %c0_17], %19 {strides = array<i32>} : memref<1x4x8x8xbf16, #tpu.memory_space<vmem>>, vector<1x1x8x8xbf16>,
    %20 = vector.extract_strided_slice %7 {offsets = [0, 8], sizes = [8, 8], strides = [1, 1]} : vector<8x96xbf16> to vector<8x8xbf16>
    %c0_18 = arith.constant 0 : index
    %c1 = arith.constant 1 : index
    %c0_19 = arith.constant 0 : index
    %c0_20 = arith.constant 0 : index
    %21 = vector.load %arg5[%c0_18, %c1, %c0_19, %c0_20] : memref<1x4x8x8xbf16, #tpu.memory_space<vmem>>, vector<1x1x8x8xbf16>
    %22 = vector.shape_cast %21 : vector<1x1x8x8xbf16> to vector<8x8xbf16>
    %23 = vector.shape_cast %20 : vector<8x8xbf16> to vector<1x1x8x8xbf16>
    tpu.vector_store %arg5[%c0_18, %c1, %c0_19, %c0_20], %23 {strides = array<i32>} : memref<1x4x8x8xbf16, #tpu.memory_space<vmem>>, vector<1x1x8x8xbf16>,
    %24 = vector.extract_strided_slice %7 {offsets = [0, 40], sizes = [8, 8], strides = [1, 1]} : vector<8x96xbf16> to vector<8x8xbf16>
    %c0_21 = arith.constant 0 : index
    %c1_22 = arith.constant 1 : index
    %c0_23 = arith.constant 0 : index
    %c0_24 = arith.constant 0 : index
    %25 = vector.load %arg6[%c0_21, %c1_22, %c0_23, %c0_24] : memref<1x4x8x8xbf16, #tpu.memory_space<vmem>>, vector<1x1x8x8xbf16>
    %26 = vector.shape_cast %25 : vector<1x1x8x8xbf16> to vector<8x8xbf16>
    %27 = vector.shape_cast %24 : vector<8x8xbf16> to vector<1x1x8x8xbf16>
    tpu.vector_store %arg6[%c0_21, %c1_22, %c0_23, %c0_24], %27 {strides = array<i32>} : memref<1x4x8x8xbf16, #tpu.memory_space<vmem>>, vector<1x1x8x8xbf16>,
    %28 = vector.extract_strided_slice %7 {offsets = [0, 72], sizes = [8, 8], strides = [1, 1]} : vector<8x96xbf16> to vector<8x8xbf16>
    %c0_25 = arith.constant 0 : index
    %c1_26 = arith.constant 1 : index
    %c0_27 = arith.constant 0 : index
    %c0_28 = arith.constant 0 : index
    %29 = vector.load %arg7[%c0_25, %c1_26, %c0_27, %c0_28] : memref<1x4x8x8xbf16, #tpu.memory_space<vmem>>, vector<1x1x8x8xbf16>
    %30 = vector.shape_cast %29 : vector<1x1x8x8xbf16> to vector<8x8xbf16>
    %31 = vector.shape_cast %28 : vector<8x8xbf16> to vector<1x1x8x8xbf16>
    tpu.vector_store %arg7[%c0_25, %c1_26, %c0_27, %c0_28], %31 {strides = array<i32>} : memref<1x4x8x8xbf16, #tpu.memory_space<vmem>>, vector<1x1x8x8xbf16>,
    %32 = vector.extract_strided_slice %7 {offsets = [0, 16], sizes = [8, 8], strides = [1, 1]} : vector<8x96xbf16> to vector<8x8xbf16>
    %c0_29 = arith.constant 0 : index
    %c2 = arith.constant 2 : index
    %c0_30 = arith.constant 0 : index
    %c0_31 = arith.constant 0 : index
    %33 = vector.load %arg5[%c0_29, %c2, %c0_30, %c0_31] : memref<1x4x8x8xbf16, #tpu.memory_space<vmem>>, vector<1x1x8x8xbf16>
    %34 = vector.shape_cast %33 : vector<1x1x8x8xbf16> to vector<8x8xbf16>
    %35 = vector.shape_cast %32 : vector<8x8xbf16> to vector<1x1x8x8xbf16>
    tpu.vector_store %arg5[%c0_29, %c2, %c0_30, %c0_31], %35 {strides = array<i32>} : memref<1x4x8x8xbf16, #tpu.memory_space<vmem>>, vector<1x1x8x8xbf16>,
    %36 = vector.extract_strided_slice %7 {offsets = [0, 48], sizes = [8, 8], strides = [1, 1]} : vector<8x96xbf16> to vector<8x8xbf16>
    %c0_32 = arith.constant 0 : index
    %c2_33 = arith.constant 2 : index
    %c0_34 = arith.constant 0 : index
    %c0_35 = arith.constant 0 : index
    %37 = vector.load %arg6[%c0_32, %c2_33, %c0_34, %c0_35] : memref<1x4x8x8xbf16, #tpu.memory_space<vmem>>, vector<1x1x8x8xbf16>
    %38 = vector.shape_cast %37 : vector<1x1x8x8xbf16> to vector<8x8xbf16>
    %39 = vector.shape_cast %36 : vector<8x8xbf16> to vector<1x1x8x8xbf16>
    tpu.vector_store %arg6[%c0_32, %c2_33, %c0_34, %c0_35], %39 {strides = array<i32>} : memref<1x4x8x8xbf16, #tpu.memory_space<vmem>>, vector<1x1x8x8xbf16>,
    %40 = vector.extract_strided_slice %7 {offsets = [0, 80], sizes = [8, 8], strides = [1, 1]} : vector<8x96xbf16> to vector<8x8xbf16>
    %c0_36 = arith.constant 0 : index
    %c2_37 = arith.constant 2 : index
    %c0_38 = arith.constant 0 : index
    %c0_39 = arith.constant 0 : index
    %41 = vector.load %arg7[%c0_36, %c2_37, %c0_38, %c0_39] : memref<1x4x8x8xbf16, #tpu.memory_space<vmem>>, vector<1x1x8x8xbf16>
    %42 = vector.shape_cast %41 : vector<1x1x8x8xbf16> to vector<8x8xbf16>
    %43 = vector.shape_cast %40 : vector<8x8xbf16> to vector<1x1x8x8xbf16>
    tpu.vector_store %arg7[%c0_36, %c2_37, %c0_38, %c0_39], %43 {strides = array<i32>} : memref<1x4x8x8xbf16, #tpu.memory_space<vmem>>, vector<1x1x8x8xbf16>,
    %44 = vector.extract_strided_slice %7 {offsets = [0, 24], sizes = [8, 8], strides = [1, 1]} : vector<8x96xbf16> to vector<8x8xbf16>
    %c0_40 = arith.constant 0 : index
    %c3 = arith.constant 3 : index
    %c0_41 = arith.constant 0 : index
    %c0_42 = arith.constant 0 : index
    %45 = vector.load %arg5[%c0_40, %c3, %c0_41, %c0_42] : memref<1x4x8x8xbf16, #tpu.memory_space<vmem>>, vector<1x1x8x8xbf16>
    %46 = vector.shape_cast %45 : vector<1x1x8x8xbf16> to vector<8x8xbf16>
    %47 = vector.shape_cast %44 : vector<8x8xbf16> to vector<1x1x8x8xbf16>
    tpu.vector_store %arg5[%c0_40, %c3, %c0_41, %c0_42], %47 {strides = array<i32>} : memref<1x4x8x8xbf16, #tpu.memory_space<vmem>>, vector<1x1x8x8xbf16>,
    %48 = vector.extract_strided_slice %7 {offsets = [0, 56], sizes = [8, 8], strides = [1, 1]} : vector<8x96xbf16> to vector<8x8xbf16>
    %c0_43 = arith.constant 0 : index
    %c3_44 = arith.constant 3 : index
    %c0_45 = arith.constant 0 : index
    %c0_46 = arith.constant 0 : index
    %49 = vector.load %arg6[%c0_43, %c3_44, %c0_45, %c0_46] : memref<1x4x8x8xbf16, #tpu.memory_space<vmem>>, vector<1x1x8x8xbf16>
    %50 = vector.shape_cast %49 : vector<1x1x8x8xbf16> to vector<8x8xbf16>
    %51 = vector.shape_cast %48 : vector<8x8xbf16> to vector<1x1x8x8xbf16>
    tpu.vector_store %arg6[%c0_43, %c3_44, %c0_45, %c0_46], %51 {strides = array<i32>} : memref<1x4x8x8xbf16, #tpu.memory_space<vmem>>, vector<1x1x8x8xbf16>,
    %52 = vector.extract_strided_slice %7 {offsets = [0, 88], sizes = [8, 8], strides = [1, 1]} : vector<8x96xbf16> to vector<8x8xbf16>
    %c0_47 = arith.constant 0 : index
    %c3_48 = arith.constant 3 : index
    %c0_49 = arith.constant 0 : index
    %c0_50 = arith.constant 0 : index
    %53 = vector.load %arg7[%c0_47, %c3_48, %c0_49, %c0_50] : memref<1x4x8x8xbf16, #tpu.memory_space<vmem>>, vector<1x1x8x8xbf16>
    %54 = vector.shape_cast %53 : vector<1x1x8x8xbf16> to vector<8x8xbf16>
    %55 = vector.shape_cast %52 : vector<8x8xbf16> to vector<1x1x8x8xbf16>
    tpu.vector_store %arg7[%c0_47, %c3_48, %c0_49, %c0_50], %55 {strides = array<i32>} : memref<1x4x8x8xbf16, #tpu.memory_space<vmem>>, vector<1x1x8x8xbf16>,
    return
  }
  func.func @transform_0(%arg0: i32, %arg1: i32) -> (i32, i32, i32) {
    %c0_i32 = arith.constant 0 : i32
    %c0_i32_0 = arith.constant 0 : i32
    return %arg0, %arg1, %c0_i32 : i32, i32, i32
  }
  func.func @transform_1(%arg0: i32, %arg1: i32) -> (i32, i32) {
    %c0_i32 = arith.constant 0 : i32
    %c0_i32_0 = arith.constant 0 : i32
    %c0_i32_1 = arith.constant 0 : i32
    return %c0_i32, %c0_i32_0 : i32, i32
  }
  func.func @transform_2(%arg0: i32, %arg1: i32) -> (i32, i32) {
    %c0_i32 = arith.constant 0 : i32
    %c0_i32_0 = arith.constant 0 : i32
    %c0_i32_1 = arith.constant 0 : i32
    return %c0_i32, %c0_i32_0 : i32, i32
  }
  func.func @transform_3(%arg0: i32, %arg1: i32) -> (i32, i32, i32, i32) {
    %c0_i32 = arith.constant 0 : i32
    %c0_i32_0 = arith.constant 0 : i32
    %c0_i32_1 = arith.constant 0 : i32
    return %arg0, %c0_i32, %arg1, %c0_i32_0 : i32, i32, i32, i32
  }
  func.func @transform_4(%arg0: i32, %arg1: i32) -> (i32, i32, i32, i32) {
    %c0_i32 = arith.constant 0 : i32
    %c0_i32_0 = arith.constant 0 : i32
    %c0_i32_1 = arith.constant 0 : i32
    return %arg0, %c0_i32, %arg1, %c0_i32_0 : i32, i32, i32, i32
  }
  func.func @transform_5(%arg0: i32, %arg1: i32) -> (i32, i32, i32, i32) {
    %c0_i32 = arith.constant 0 : i32
    %c0_i32_0 = arith.constant 0 : i32
    %c0_i32_1 = arith.constant 0 : i32
    return %arg0, %c0_i32, %arg1, %c0_i32_0 : i32, i32, i32, i32
  }
}

</mosaic_0001>

<llo_original>
// kernel: tpu_custom_call.1
$region0: #{tpu_custom_call.1}
  #allocation0 [shape = 'u32[]', space=smem, size = 0x4, offset = 0x4, fixed_abs, tag = 'smem constant byte address 0x4 - core index']
  #allocation1 [shape = 'u32[144,128]{1,0:T(1,128)}', space=vmem, size = 0x12000, scoped, tag = 'internal scratch']
  %s0 = inlined_call_operand.hbm [shape: f32[8,128], index: 0, kind: input, shape index: {}]
  %s1 = inlined_call_operand.hbm [shape: f32[16,128], index: 1, kind: output, shape index: {}]
  %s2 = sld [smem:[#allocation0]]
  $region41: #{tpu_custom_call.1} parent=0
    _
  %s4 = ssub.s32 1, %s2
  %s5 = scalar_select 0, %s4, %s2
  $region1: #{tpu_custom_call.1} parent=0
    #allocation2 [shape = 'u8[4096]{0}', space=vmem, size = 0x1000, scoped, tag = 'input window, operand 0, single buffered']
    #allocation3 [shape = 's32[2]{0}', space=sflag, size = 0x8, scoped, tag = 'scoped memory for tpu_custom_call.1']
    #allocation4 [shape = 's32[2]{0}', space=sflag, size = 0x8, scoped, tag = 'scoped memory for tpu_custom_call.1']
    #allocation5 [shape = 'u8[8192]{0}', space=vmem, size = 0x2000, scoped, tag = 'output window, operand 0']
    %6 = vsyncpa [#allocation3], 0
    %7 = vsyncpa [#allocation4], 0
    %s8 = scalar_lea.sflag [#allocation4], 1
    %9 = vsyncpa %s8, 0
    loop: start=0, step=1, limit=4
    $region2: #{tpu_custom_call.1} parent=1 // loop_pre_header
      _
    $region3: #{tpu_custom_call.1} parent=1 // loop_header
      %s11 = sphi 0, %s15
      %p12 = scmp.ge.s32.totalorder %s11, 4
      %s19 = sphi 0, %s19
      %s21 = sphi 0, %s19
      %s22 = sphi 0, %s21
      %s36 = sphi 0, %s22
      %s42 = sphi 0, %s44
      %s45 = sphi 0, %s42
      %s46 = sphi 0, %s45
      %s62 = sphi 0, %s46
    $region4: #{tpu_custom_call.1} parent=1 // loop_header_branch
      %14 = sbr.rel (%p12) target = $region8
    $region5: #{tpu_custom_call.1} parent=1 // loop_body
      %s16 = ssub.s32 %s11, 1
      %s17 = ssub.s32 %s11, 2
      %s18 = sadd.s32 %s11, 1
      %s20 = sadd.s32 %s19, 1
      %p23 = scmp.eq.s32.totalorder %s11, 1
      %p24 = scmp.ne.s32.totalorder %s19, %s21
      %p25 = scmp.eq.s32.totalorder %s11, 0
      %p26 = por %p24, %p25
      %p27 = scmp.ne.s32.totalorder %s19, %s21
      %p28 = scmp.eq.s32.totalorder %s16, 1
      %p29 = por %p27, %p28
      %p30 = scmp.ne.s32.totalorder %s21, %s22
      %p31 = scmp.eq.s32.totalorder %s16, 0
      %p32 = por %p30, %p31
      %p33 = scmp.ne.s32.totalorder %s21, %s22
      %p34 = scmp.eq.s32.totalorder %s17, 1
      %p35 = por %p33, %p34
      %p37 = scmp.ne.s32.totalorder %s22, %s36
      %p38 = scmp.eq.s32.totalorder %s17, 0
      %p39 = por %p37, %p38
      %s40 = ssub.s32 %s11, %s18
      %p41 = scmp.eq.s32.totalorder %s40, 0
      %s43 = sadd.s32 %s42, 1
      %s44 = scalar_select %p41, %s42, %s43
      %p47 = pneg %p41
      %p48 = scmp.eq.s32.totalorder %s11, 1
      %p49 = por %p47, %p48
      %p50 = scmp.ne.s32.totalorder %s42, %s45
      %p51 = scmp.eq.s32.totalorder %s11, 0
      %p52 = por %p50, %p51
      %p53 = scmp.ne.s32.totalorder %s42, %s45
      %p54 = scmp.eq.s32.totalorder %s16, 1
      %p55 = por %p53, %p54
      %p56 = scmp.ne.s32.totalorder %s45, %s46
      %p57 = scmp.eq.s32.totalorder %s16, 0
      %p58 = por %p56, %p57
      %p59 = scmp.ne.s32.totalorder %s45, %s46
      %p60 = scmp.eq.s32.totalorder %s17, 1
      %p61 = por %p59, %p60
      %p63 = scmp.ne.s32.totalorder %s46, %s62
      %p64 = scmp.eq.s32.totalorder %s17, 0
      %p65 = por %p63, %p64
      %p66 = scmp.le.s32.totalorder 1, %s11
      %p67 = scmp.lt.s32.totalorder %s11, 3
      %p68 = pnand %p66, %p67
      %p69 = pneg %p68
      // Predicated region
      $region9: #{tpu_custom_call.1} parent=5 // pred_check
        _
      $region10: #{tpu_custom_call.1} parent=5 // pred_check_branch
        %71 = sbr.rel (%p68) target = $region12
      $region11: #{tpu_custom_call.1} parent=5 // pred_region
        %s72 = ssub.s32 %s11, 1
        // Predicated region
        $region13: #{tpu_custom_call.1} parent=11 // pred_check
          %p73 = pneg %p32
        $region14: #{tpu_custom_call.1} parent=11 // pred_check_branch
          %75 = sbr.rel (%p73) target = $region16
        $region15: #{tpu_custom_call.1} parent=11 // pred_region
          %s77 = ssub.s32 128, 128
          %78 = vsyncadd [#allocation3], %s77
          %s80 = sshll.u32 [#allocation2], 4
          %s81 = int_to_ptr.vmem [resolvable:$true] %s80
          %83 = dma.hbm_to_vmem [thread:$0]  %s0, 128, %s81, [#allocation3]
        $region16: #{tpu_custom_call.1} parent=11 // pred_fallthru
          _
      $region12: #{tpu_custom_call.1} parent=5 // pred_fallthru
        _
      %p84 = scmp.lt.s32.totalorder %s11, 2
      // Predicated region
      $region17: #{tpu_custom_call.1} parent=5 // pred_check
        %p85 = pneg %p84
      $region18: #{tpu_custom_call.1} parent=5 // pred_check_branch
        %87 = sbr.rel (%p85) target = $region20
      $region19: #{tpu_custom_call.1} parent=5 // pred_region
        _
      $region20: #{tpu_custom_call.1} parent=5 // pred_fallthru
        _
      %p88 = scmp.le.s32.totalorder 1, %s11
      %p89 = scmp.lt.s32.totalorder %s11, 3
      %p90 = pnand %p88, %p89
      %p91 = pneg %p90
      // Predicated region
      $region21: #{tpu_custom_call.1} parent=5 // pred_check
        _
      $region22: #{tpu_custom_call.1} parent=5 // pred_check_branch
        %93 = sbr.rel (%p90) target = $region24
      $region23: #{tpu_custom_call.1} parent=5 // pred_region
        %s94 = ssub.s32 %s11, 1
        // Predicated region
        $region25: #{tpu_custom_call.1} parent=23 // pred_check
          %p95 = pneg %p32
        $region26: #{tpu_custom_call.1} parent=23 // pred_check_branch
          %97 = sbr.rel (%p95) target = $region28
        $region27: #{tpu_custom_call.1} parent=23 // pred_region
          %98 = dma.done [#allocation3], 128
        $region28: #{tpu_custom_call.1} parent=23 // pred_fallthru
          _
        %p99 = pneg %p32
        %p100 = pneg %p29
        %p101 = pneg %p58
        %p102 = pneg %p55
        %s103 = sand.u32 %s45, 1
        %s104 = scalar_lea.sflag [#allocation4], %s103
        %s105 = sand.u32 %s45, 1
        %s106 = smul.addr %s105, 8
        %s107 = scalar_lea.vmem [#allocation5], %s106
        %v108 = vld [vmem:[#allocation2] sm:$0xff]
        %v109 = vadd.f32 %v108, 1.0
        %110 = vst [vmem:[%s107] sm:$0xff] %v109
        %s111 = sand.u32 %s45, 1
        %s112 = scalar_lea.sflag [#allocation4], %s111
        %s113 = sand.u32 %s45, 1
        %s114 = smul.addr %s113, 8
        %s115 = scalar_lea.vmem [#allocation5], %s114
        // Predicated region
        $region29: #{tpu_custom_call.1} parent=23 // pred_check
          %p116 = pneg %p55
        $region30: #{tpu_custom_call.1} parent=23 // pred_check_branch
          %118 = sbr.rel (%p116) target = $region32
        $region31: #{tpu_custom_call.1} parent=23 // pred_region
          %s120 = ssub.s32 128, 128
          %121 = vsyncadd %s112, %s120
          %s122 = smul.addr %s16, 128
          %s123 = scalar_lea.hbm %s1, %s122
          %s125 = sshll.u32 %s115, 4
          %s126 = int_to_ptr.vmem [resolvable:$true] %s125
          %128 = dma.vmem_to_hbm [thread:$0]  %s126, 128, %s123, %s112
        $region32: #{tpu_custom_call.1} parent=23 // pred_fallthru
          _
      $region24: #{tpu_custom_call.1} parent=5 // pred_fallthru
        _
      %p129 = scmp.le.s32.totalorder 2, %s11
      // Predicated region
      $region33: #{tpu_custom_call.1} parent=5 // pred_check
        %p130 = pneg %p129
      $region34: #{tpu_custom_call.1} parent=5 // pred_check_branch
        %132 = sbr.rel (%p130) target = $region36
      $region35: #{tpu_custom_call.1} parent=5 // pred_region
        %s133 = ssub.s32 %s11, 2
        // Predicated region
        $region37: #{tpu_custom_call.1} parent=35 // pred_check
          %p134 = pneg %p61
        $region38: #{tpu_custom_call.1} parent=35 // pred_check_branch
          %136 = sbr.rel (%p134) target = $region40
        $region39: #{tpu_custom_call.1} parent=35 // pred_region
          %s137 = sand.u32 %s46, 1
          %s138 = scalar_lea.sflag [#allocation4], %s137
          %s139 = sand.u32 %s46, 1
          %s140 = smul.addr %s139, 8
          %s141 = scalar_lea.vmem [#allocation5], %s140
          %142 = dma.done %s138, 128
        $region40: #{tpu_custom_call.1} parent=35 // pred_fallthru
          _
      $region36: #{tpu_custom_call.1} parent=5 // pred_fallthru
        _
    $region6: #{tpu_custom_call.1} parent=1 // loop_footer
      %s15 = sadd.s32 1, %s11
    $region7: #{tpu_custom_call.1} parent=1 // loop_footer_branch
      %10 = sbr.rel target = $region3
    $region8: #{tpu_custom_call.1} parent=1 // loop_exit
      _
    %143 = vsyncpa [#allocation3], 1
    %s144 = scalar_lea.sflag [#allocation3], 1
    %145 = vsyncpa %s144, 1
    %146 = vsyncpa [#allocation4], 1
    %s147 = scalar_lea.sflag [#allocation4], 1
    %148 = vsyncpa %s147, 1

// kernel: tpu_custom_call.1
$region0: #{tpu_custom_call.1}
  #allocation0 [shape = 'u32[]', space=smem, size = 0x4, offset = 0x4, fixed_abs, tag = 'smem constant byte address 0x4 - core index']
  #allocation1 [shape = 'u32[144,128]{1,0:T(1,128)}', space=vmem, size = 0x12000, scoped, tag = 'internal scratch']
  %s0 = inlined_call_operand.hbm [shape: bf16[2,8,32], index: 0, kind: input, shape index: {}]
  %s1 = inlined_call_operand.hbm [shape: bf16[32,96], index: 1, kind: input, shape index: {}]
  %s2 = inlined_call_operand.vmem [shape: f32[1,96], index: 2, kind: input, shape index: {}]
  %s3 = inlined_call_operand.hbm [shape: bf16[2,4,8,8], index: 3, kind: output, shape index: {0}]
  %s4 = inlined_call_operand.hbm [shape: bf16[2,4,8,8], index: 4, kind: output, shape index: {1}]
  %s5 = inlined_call_operand.hbm [shape: bf16[2,4,8,8], index: 5, kind: output, shape index: {2}]
  %6 = xla_tuple %s3, %s4, %s5
  %s7 = sld [smem:[#allocation0]]
  $region69: #{tpu_custom_call.1} parent=0
    _
  %s9 = ssub.s32 1, %s7
  %s10 = scalar_select 0, %s9, %s7
  $region1: #{tpu_custom_call.1} parent=0
    #allocation2 [shape = 'u8[4096]{0}', space=vmem, size = 0x1000, scoped, tag = 'input window, operand 0']
    #allocation3 [shape = 's32[2]{0}', space=sflag, size = 0x8, scoped, tag = 'scoped memory for tpu_custom_call.1']
    #allocation4 [shape = 's32[2]{0}', space=sflag, size = 0x8, scoped, tag = 'scoped memory for tpu_custom_call.1']
    #allocation5 [shape = 'u8[8192]{0}', space=vmem, size = 0x2000, scoped, tag = 'input window, operand 1, single buffered']
    #allocation6 [shape = 's32[1]{0}', space=sflag, size = 0x4, scoped, tag = 'scoped memory for tpu_custom_call.1']
    #allocation7 [shape = 'u8[16384]{0}', space=vmem, size = 0x4000, scoped, tag = 'output window, operand 0']
    #allocation8 [shape = 'u8[16384]{0}', space=vmem, size = 0x4000, scoped, tag = 'output window, operand 1']
    #allocation9 [shape = 's32[2]{0}', space=sflag, size = 0x8, scoped, tag = 'scoped memory for tpu_custom_call.1']
    #allocation10 [shape = 'u8[16384]{0}', space=vmem, size = 0x4000, scoped, tag = 'output window, operand 2']
    %11 = vsyncpa [#allocation3], 0
    %s12 = scalar_lea.sflag [#allocation3], 1
    %13 = vsyncpa %s12, 0
    %14 = vsyncpa [#allocation6], 0
    %15 = vsyncpa [#allocation4], 0
    %s16 = scalar_lea.sflag [#allocation4], 1
    %17 = vsyncpa %s16, 0
    %18 = vsyncpa [#allocation9], 0
    %s19 = scalar_lea.sflag [#allocation9], 1
    %20 = vsyncpa %s19, 0
    loop: start=0, step=1, limit=4
    $region2: #{tpu_custom_call.1} parent=1 // loop_pre_header
      _
    $region3: #{tpu_custom_call.1} parent=1 // loop_header
      %s22 = sphi 0, %s26
      %p23 = scmp.ge.s32.totalorder %s22, 4
      %s29 = sphi 0, %s41
      %s30 = sphi 0, %s37
      %s31 = sphi 0, %s29
      %s32 = sphi 0, %s30
      %s33 = sphi 0, %s31
      %s34 = sphi 0, %s32
      %s46 = sphi 0, %s48
      %s49 = sphi 0, %s46
      %s50 = sphi 0, %s49
      %s66 = sphi 0, %s50
      %s70 = sphi 0, %s70
      %s72 = sphi 0, %s70
      %s73 = sphi 0, %s72
      %s87 = sphi 0, %s73
      %s91 = sphi 0, %s91
      %s93 = sphi 0, %s91
      %s94 = sphi 0, %s93
      %s108 = sphi 0, %s94
      %s116 = sphi 0, %s118
      %s119 = sphi 0, %s116
      %s120 = sphi 0, %s119
      %s136 = sphi 0, %s120
      %s144 = sphi 0, %s146
      %s147 = sphi 0, %s144
      %s148 = sphi 0, %s147
      %s164 = sphi 0, %s148
      %s172 = sphi 0, %s174
      %s175 = sphi 0, %s172
      %s176 = sphi 0, %s175
      %s192 = sphi 0, %s176
    $region4: #{tpu_custom_call.1} parent=1 // loop_header_branch
      %25 = sbr.rel (%p23) target = $region8
    $region5: #{tpu_custom_call.1} parent=1 // loop_body
      %s27 = ssub.s32 %s22, 1
      %s28 = ssub.s32 %s22, 2
      %s35 = sadd.s32 1, %s30
      %p36 = scmp.ge.s32.totalorder %s35, 1
      %s37 = scalar_select %p36, 0, %s35
      %s38 = sadd.s32 1, %s29
      %s39 = scalar_select %p36, %s38, %s29
      %p40 = scmp.ge.s32.totalorder %s39, 2
      %s41 = scalar_select %p40, 0, %s39
      %s42 = ssub.s32 %s29, %s41
      %s43 = ssub.s32 %s30, %s37
      %s44 = sor.u32 %s42, %s43
      %p45 = scmp.eq.s32.totalorder %s44, 0
      %s47 = sadd.s32 %s46, 1
      %s48 = scalar_select %p45, %s46, %s47
      %p51 = pneg %p45
      %p52 = scmp.eq.s32.totalorder %s22, 1
      %p53 = por %p51, %p52
      %p54 = scmp.ne.s32.totalorder %s46, %s49
      %p55 = scmp.eq.s32.totalorder %s22, 0
      %p56 = por %p54, %p55
      %p57 = scmp.ne.s32.totalorder %s46, %s49
      %p58 = scmp.eq.s32.totalorder %s27, 1
      %p59 = por %p57, %p58
      %p60 = scmp.ne.s32.totalorder %s49, %s50
      %p61 = scmp.eq.s32.totalorder %s27, 0
      %p62 = por %p60, %p61
      %p63 = scmp.ne.s32.totalorder %s49, %s50
      %p64 = scmp.eq.s32.totalorder %s28, 1
      %p65 = por %p63, %p64
      %p67 = scmp.ne.s32.totalorder %s50, %s66
      %p68 = scmp.eq.s32.totalorder %s28, 0
      %p69 = por %p67, %p68
      %s71 = sadd.s32 %s70, 1
      %p74 = scmp.eq.s32.totalorder %s22, 1
      %p75 = scmp.ne.s32.totalorder %s70, %s72
      %p76 = scmp.eq.s32.totalorder %s22, 0
      %p77 = por %p75, %p76
      %p78 = scmp.ne.s32.totalorder %s70, %s72
      %p79 = scmp.eq.s32.totalorder %s27, 1
      %p80 = por %p78, %p79
      %p81 = scmp.ne.s32.totalorder %s72, %s73
      %p82 = scmp.eq.s32.totalorder %s27, 0
      %p83 = por %p81, %p82
      %p84 = scmp.ne.s32.totalorder %s72, %s73
      %p85 = scmp.eq.s32.totalorder %s28, 1
      %p86 = por %p84, %p85
      %p88 = scmp.ne.s32.totalorder %s73, %s87
      %p89 = scmp.eq.s32.totalorder %s28, 0
      %p90 = por %p88, %p89
      %s92 = sadd.s32 %s91, 1
      %p95 = scmp.eq.s32.totalorder %s22, 1
      %p96 = scmp.ne.s32.totalorder %s91, %s93
      %p97 = scmp.eq.s32.totalorder %s22, 0
      %p98 = por %p96, %p97
      %p99 = scmp.ne.s32.totalorder %s91, %s93
      %p100 = scmp.eq.s32.totalorder %s27, 1
      %p101 = por %p99, %p100
      %p102 = scmp.ne.s32.totalorder %s93, %s94
      %p103 = scmp.eq.s32.totalorder %s27, 0
      %p104 = por %p102, %p103
      %p105 = scmp.ne.s32.totalorder %s93, %s94
      %p106 = scmp.eq.s32.totalorder %s28, 1
      %p107 = por %p105, %p106
      %p109 = scmp.ne.s32.totalorder %s94, %s108
      %p110 = scmp.eq.s32.totalorder %s28, 0
      %p111 = por %p109, %p110
      %s112 = ssub.s32 %s29, %s41
      %s113 = ssub.s32 %s30, %s37
      %s114 = sor.u32 %s112, %s113
      %p115 = scmp.eq.s32.totalorder %s114, 0
      %s117 = sadd.s32 %s116, 1
      %s118 = scalar_select %p115, %s116, %s117
      %p121 = pneg %p115
      %p122 = scmp.eq.s32.totalorder %s22, 1
      %p123 = por %p121, %p122
      %p124 = scmp.ne.s32.totalorder %s116, %s119
      %p125 = scmp.eq.s32.totalorder %s22, 0
      %p126 = por %p124, %p125
      %p127 = scmp.ne.s32.totalorder %s116, %s119
      %p128 = scmp.eq.s32.totalorder %s27, 1
      %p129 = por %p127, %p128
      %p130 = scmp.ne.s32.totalorder %s119, %s120
      %p131 = scmp.eq.s32.totalorder %s27, 0
      %p132 = por %p130, %p131
      %p133 = scmp.ne.s32.totalorder %s119, %s120
      %p134 = scmp.eq.s32.totalorder %s28, 1
      %p135 = por %p133, %p134
      %p137 = scmp.ne.s32.totalorder %s120, %s136
      %p138 = scmp.eq.s32.totalorder %s28, 0
      %p139 = por %p137, %p138
      %s140 = ssub.s32 %s29, %s41
      %s141 = ssub.s32 %s30, %s37
      %s142 = sor.u32 %s140, %s141
      %p143 = scmp.eq.s32.totalorder %s142, 0
      %s145 = sadd.s32 %s144, 1
      %s146 = scalar_select %p143, %s144, %s145
      %p149 = pneg %p143
      %p150 = scmp.eq.s32.totalorder %s22, 1
      %p151 = por %p149, %p150
      %p152 = scmp.ne.s32.totalorder %s144, %s147
      %p153 = scmp.eq.s32.totalorder %s22, 0
      %p154 = por %p152, %p153
      %p155 = scmp.ne.s32.totalorder %s144, %s147
      %p156 = scmp.eq.s32.totalorder %s27, 1
      %p157 = por %p155, %p156
      %p158 = scmp.ne.s32.totalorder %s147, %s148
      %p159 = scmp.eq.s32.totalorder %s27, 0
      %p160 = por %p158, %p159
      %p161 = scmp.ne.s32.totalorder %s147, %s148
      %p162 = scmp.eq.s32.totalorder %s28, 1
      %p163 = por %p161, %p162
      %p165 = scmp.ne.s32.totalorder %s148, %s164
      %p166 = scmp.eq.s32.totalorder %s28, 0
      %p167 = por %p165, %p166
      %s168 = ssub.s32 %s29, %s41
      %s169 = ssub.s32 %s30, %s37
      %s170 = sor.u32 %s168, %s169
      %p171 = scmp.eq.s32.totalorder %s170, 0
      %s173 = sadd.s32 %s172, 1
      %s174 = scalar_select %p171, %s172, %s173
      %p177 = pneg %p171
      %p178 = scmp.eq.s32.totalorder %s22, 1
      %p179 = por %p177, %p178
      %p180 = scmp.ne.s32.totalorder %s172, %s175
      %p181 = scmp.eq.s32.totalorder %s22, 0
      %p182 = por %p180, %p181
      %p183 = scmp.ne.s32.totalorder %s172, %s175
      %p184 = scmp.eq.s32.totalorder %s27, 1
      %p185 = por %p183, %p184
      %p186 = scmp.ne.s32.totalorder %s175, %s176
      %p187 = scmp.eq.s32.totalorder %s27, 0
      %p188 = por %p186, %p187
      %p189 = scmp.ne.s32.totalorder %s175, %s176
      %p190 = scmp.eq.s32.totalorder %s28, 1
      %p191 = por %p189, %p190
      %p193 = scmp.ne.s32.totalorder %s176, %s192
      %p194 = scmp.eq.s32.totalorder %s28, 0
      %p195 = por %p193, %p194
      %p196 = scmp.le.s32.totalorder 1, %s22
      %p197 = scmp.lt.s32.totalorder %s22, 3
      %p198 = pnand %p196, %p197
      %p199 = pneg %p198
      // Predicated region
      $region9: #{tpu_custom_call.1} parent=5 // pred_check
        _
      $region10: #{tpu_custom_call.1} parent=5 // pred_check_branch
        %201 = sbr.rel (%p198) target = $region12
      $region11: #{tpu_custom_call.1} parent=5 // pred_region
        %s202 = ssub.s32 %s22, 1
        // Predicated region
        $region13: #{tpu_custom_call.1} parent=11 // pred_check
          %p203 = pneg %p83
        $region14: #{tpu_custom_call.1} parent=11 // pred_check_branch
          %205 = sbr.rel (%p203) target = $region16
        $region15: #{tpu_custom_call.1} parent=11 // pred_region
          %s207 = ssub.s32 256, 256
          %208 = vsyncadd [#allocation6], %s207
          %s209 = sshll.u32 [#allocation5], 4
          %s210 = int_to_ptr.vmem [resolvable:$true] %s209
          %215 = dma.hbm_to_vmem [thread:$0]  %s1, 256, %s210, [#allocation6], 64, 64, 4
        $region16: #{tpu_custom_call.1} parent=11 // pred_fallthru
          _
        // Predicated region
        $region17: #{tpu_custom_call.1} parent=11 // pred_check
          %p216 = pneg %p104
        $region18: #{tpu_custom_call.1} parent=11 // pred_check_branch
          %218 = sbr.rel (%p216) target = $region20
        $region19: #{tpu_custom_call.1} parent=11 // pred_region
          _
        $region20: #{tpu_custom_call.1} parent=11 // pred_fallthru
          _
      $region12: #{tpu_custom_call.1} parent=5 // pred_fallthru
        _
      %p219 = scmp.lt.s32.totalorder %s22, 2
      // Predicated region
      $region21: #{tpu_custom_call.1} parent=5 // pred_check
        %p220 = pneg %p219
      $region22: #{tpu_custom_call.1} parent=5 // pred_check_branch
        %222 = sbr.rel (%p220) target = $region24
      $region23: #{tpu_custom_call.1} parent=5 // pred_region
        // Predicated region
        $region25: #{tpu_custom_call.1} parent=23 // pred_check
          %p223 = pneg %p56
        $region26: #{tpu_custom_call.1} parent=23 // pred_check_branch
          %225 = sbr.rel (%p223) target = $region28
        $region27: #{tpu_custom_call.1} parent=23 // pred_region
          %s226 = sand.u32 %s46, 1
          %s227 = scalar_lea.sflag [#allocation3], %s226
          %s228 = sand.u32 %s46, 1
          %s229 = smul.addr %s228, 4
          %s230 = scalar_lea.vmem [#allocation2], %s229
          %s232 = ssub.s32 64, 64
          %233 = vsyncadd %s227, %s232
          %s234 = sadd.s32 %s30, %s29
          %s235 = smul.addr %s234, 64
          %s236 = scalar_lea.hbm %s0, %s235
          %s238 = sshll.u32 %s230, 4
          %s239 = int_to_ptr.vmem [resolvable:$true] %s238
          %241 = dma.hbm_to_vmem [thread:$0]  %s236, 64, %s239, %s227
        $region28: #{tpu_custom_call.1} parent=23 // pred_fallthru
          _
      $region24: #{tpu_custom_call.1} parent=5 // pred_fallthru
        _
      %p242 = scmp.le.s32.totalorder 1, %s22
      %p243 = scmp.lt.s32.totalorder %s22, 3
      %p244 = pnand %p242, %p243
      %p245 = pneg %p244
      // Predicated region
      $region29: #{tpu_custom_call.1} parent=5 // pred_check
        _
      $region30: #{tpu_custom_call.1} parent=5 // pred_check_branch
        %247 = sbr.rel (%p244) target = $region32
      $region31: #{tpu_custom_call.1} parent=5 // pred_region
        %s248 = ssub.s32 %s22, 1
        %s249 = sand.u32 %s49, 1
        %s250 = scalar_lea.sflag [#allocation3], %s249
        %s251 = sand.u32 %s49, 1
        %s252 = smul.addr %s251, 4
        %s253 = scalar_lea.vmem [#allocation2], %s252
        // Predicated region
        $region33: #{tpu_custom_call.1} parent=31 // pred_check
          %p254 = pneg %p62
        $region34: #{tpu_custom_call.1} parent=31 // pred_check_branch
          %256 = sbr.rel (%p254) target = $region36
        $region35: #{tpu_custom_call.1} parent=31 // pred_region
          %257 = dma.done %s250, 64
        $region36: #{tpu_custom_call.1} parent=31 // pred_fallthru
          _
        // Predicated region
        $region37: #{tpu_custom_call.1} parent=31 // pred_check
          %p258 = pneg %p83
        $region38: #{tpu_custom_call.1} parent=31 // pred_check_branch
          %260 = sbr.rel (%p258) target = $region40
        $region39: #{tpu_custom_call.1} parent=31 // pred_region
          %261 = dma.done [#allocation6], 256
        $region40: #{tpu_custom_call.1} parent=31 // pred_fallthru
          _
        %s262 = sand.u32 %s49, 1
        %s263 = scalar_lea.sflag [#allocation3], %s262
        %s264 = sand.u32 %s49, 1
        %s265 = smul.addr %s264, 4
        %s266 = scalar_lea.vmem [#allocation2], %s265
        %p267 = pneg %p62
        %p268 = pneg %p59
        %p269 = pneg %p83
        %p270 = pneg %p80
        %p271 = pneg %p104
        %p272 = pneg %p101
        %p273 = pneg %p132
        %p274 = pneg %p129
        %s275 = sand.u32 %s119, 1
        %s276 = scalar_lea.sflag [#allocation4], %s275
        %s277 = sand.u32 %s119, 1
        %s278 = smul.addr %s277, 16
        %s279 = scalar_lea.vmem [#allocation7], %s278
        %p280 = pneg %p160
        %p281 = pneg %p157
        %s282 = sand.u32 %s27, 1
        %s283 = scalar_lea.sflag [#allocation9], %s282
        %s284 = sand.u32 %s147, 1
        %s285 = smul.addr %s284, 16
        %s286 = scalar_lea.vmem [#allocation8], %s285
        %p287 = pneg %p188
        %p288 = pneg %p185
        %s289 = sand.u32 %s27, 1
        %s290 = scalar_lea.sflag [#allocation9], %s289
        %s291 = sand.u32 %s175, 1
        %s292 = smul.addr %s291, 16
        %s293 = scalar_lea.vmem [#allocation10], %s292
        %v295 = vld [vmem:[%s253] sm:$0xf]
        %v296 = vld [vmem:[#allocation5] sm:$0xf]
        %v297 = vld [vmem:[#allocation5 + $0x4] sm:$0xf]
        %v298 = vld [vmem:[#allocation5 + $0x8] sm:$0xf]
        %v299 = vld [vmem:[#allocation5 + $0xc] sm:$0xf]
        %v300 = vld [vmem:[%s2] sm:$0x1]
        %v302 = vlaneseq
        %v303 = vshrl.u32 %v302, 7
        %v304 = vsub.s32 0, %v303
        %v305 = vrot.slane %v300, %v304
        %v311 = vunpack.c.l.b16 %v296
        %v312 = vunpack.c.l.b16 %v297
        %v313 = vunpack.c.l.b16 %v298
        %v314 = vunpack.c.l.b16 %v299
        %v315 = vpack.c.b16 %v312, %v311
        %v316 = vpack.c.b16 %v314, %v313
        %vm319 = vcmask 261120
        %v321 = vsel %vm319, %v295, 0
        %323 = vmatprep.subr.bf16.mxu0 0
        %324 = vmatpush1.bf16.msra.mxu0 %v315
        %325 = vmatprep.subr.bf16.mxu0 0
        %326 = vmatpush1.bf16.msra.mxu0 %v316
        %327 = vmatprep.subr.bf16.mxu0 0
        %328 = vmatpush1.bf16.msra.mxu0 0
        %329 = vmatprep.subr.bf16.mxu0 0
        %330 = vmatpush1.bf16.msra.mxu0 0
        %331 = vmatprep.subr.bf16.mxu0 0
        %332 = vmatpush1.bf16.msra.mxu0 0
        %333 = vmatprep.subr.bf16.mxu0 0
        %334 = vmatpush1.bf16.msra.mxu0 0
        %335 = vmatprep.subr.bf16.mxu0 0
        %336 = vmatpush1.bf16.msra.mxu0 0
        %337 = vmatprep.subr.bf16.mxu0 0
        %338 = vmatpush1.bf16.msra.mxu0 0
        %339 = vmatprep.subr.bf16.mxu0 0
        %340 = vmatpush1.bf16.msra.mxu0 0
        %341 = vmatprep.subr.bf16.mxu0 0
        %342 = vmatpush1.bf16.msra.mxu0 0
        %343 = vmatprep.subr.bf16.mxu0 0
        %344 = vmatpush1.bf16.msra.mxu0 0
        %345 = vmatprep.subr.bf16.mxu0 0
        %346 = vmatpush1.bf16.msra.mxu0 0
        %347 = vmatprep.subr.bf16.mxu0 0
        %348 = vmatpush1.bf16.msra.mxu0 0
        %349 = vmatprep.subr.bf16.mxu0 0
        %350 = vmatpush1.bf16.msra.mxu0 0
        %351 = vmatprep.subr.bf16.mxu0 0
        %352 = vmatpush1.bf16.msra.mxu0 0
        %353 = vmatprep.subr.bf16.mxu0 0
        %354 = vmatpush1.bf16.msra.mxu0 0
        %355 = vmatprep.mubr.bf16.mxu0 0
        %356 = vmatmul.mubr.bf16.gmra.mrb[0].mxu0 %v321
        %v357 = vpop.f32.mrb[0].mxu0
        %v358 = vadd.f32 %v305, %v357
        %v359 = vpop.f32.mrb[0].mxu0
        %v360 = vpop.f32.mrb[0].mxu0
        %v361 = vpop.f32.mrb[0].mxu0
        %362 = vdwg.mxu0
        %v363 = vpack.c.bf16 %v358, %v358
        %vm364 = vcmask 60416
        %365 = vst.msk [vmem:[%s279] sm:$0xf] %vm364, %v363
        %v367 = vunpack.c.l.b16 %v363
        %v368 = vpack.c.b16 %v367, %v367
        %369 = vrot.lane.b32.xlu0 %v368, 96
        %v370 = vpop.permute.xlu0 %369
        %372 = vst.msk [vmem:[%s286] sm:$0xf] %vm364, %v370
        %373 = vrot.lane.b32.xlu0 %v368, 64
        %v374 = vpop.permute.xlu0 %373
        %376 = vst.msk [vmem:[%s293] sm:$0xf] %vm364, %v374
        %377 = vrot.lane.b32.xlu0 %v368, 120
        %v378 = vpop.permute.xlu0 %377
        %s380 = scalar_lea.vmem %s279, 4 [#allocation7]
        %381 = vst.msk [vmem:[%s380] sm:$0xf] %vm364, %v378
        %382 = vrot.lane.b32.xlu0 %v368, 88
        %v383 = vpop.permute.xlu0 %382
        %s385 = scalar_lea.vmem %s286, 4 [#allocation8]
        %386 = vst.msk [vmem:[%s385] sm:$0xf] %vm364, %v383
        %387 = vrot.lane.b32.xlu0 %v368, 56
        %v388 = vpop.permute.xlu0 %387
        %s390 = scalar_lea.vmem %s293, 4 [#allocation10]
        %391 = vst.msk [vmem:[%s390] sm:$0xf] %vm364, %v388
        %392 = vrot.lane.b32.xlu0 %v368, 112
        %v393 = vpop.permute.xlu0 %392
        %s395 = scalar_lea.vmem %s279, 8 [#allocation7]
        %396 = vst.msk [vmem:[%s395] sm:$0xf] %vm364, %v393
        %397 = vrot.lane.b32.xlu0 %v368, 80
        %v398 = vpop.permute.xlu0 %397
        %s400 = scalar_lea.vmem %s286, 8 [#allocation8]
        %401 = vst.msk [vmem:[%s400] sm:$0xf] %vm364, %v398
        %402 = vrot.lane.b32.xlu0 %v368, 48
        %v403 = vpop.permute.xlu0 %402
        %s405 = scalar_lea.vmem %s293, 8 [#allocation10]
        %406 = vst.msk [vmem:[%s405] sm:$0xf] %vm364, %v403
        %407 = vrot.lane.b32.xlu0 %v368, 104
        %v408 = vpop.permute.xlu0 %407
        %s410 = scalar_lea.vmem %s279, 12 [#allocation7]
        %411 = vst.msk [vmem:[%s410] sm:$0xf] %vm364, %v408
        %412 = vrot.lane.b32.xlu0 %v368, 72
        %v413 = vpop.permute.xlu0 %412
        %s415 = scalar_lea.vmem %s286, 12 [#allocation8]
        %416 = vst.msk [vmem:[%s415] sm:$0xf] %vm364, %v413
        %417 = vrot.lane.b32.xlu0 %v368, 40
        %v418 = vpop.permute.xlu0 %417
        %s420 = scalar_lea.vmem %s293, 12 [#allocation10]
        %421 = vst.msk [vmem:[%s420] sm:$0xf] %vm364, %v418
        %s422 = sand.u32 %s119, 1
        %s423 = scalar_lea.sflag [#allocation4], %s422
        %s424 = sand.u32 %s119, 1
        %s425 = smul.addr %s424, 16
        %s426 = scalar_lea.vmem [#allocation7], %s425
        %s427 = sand.u32 %s27, 1
        %s428 = scalar_lea.sflag [#allocation9], %s427
        %s429 = sand.u32 %s147, 1
        %s430 = smul.addr %s429, 16
        %s431 = scalar_lea.vmem [#allocation8], %s430
        %s432 = sand.u32 %s27, 1
        %s433 = scalar_lea.sflag [#allocation9], %s432
        %s434 = sand.u32 %s175, 1
        %s435 = smul.addr %s434, 16
        %s436 = scalar_lea.vmem [#allocation10], %s435
        // Predicated region
        $region41: #{tpu_custom_call.1} parent=31 // pred_check
          %p437 = pneg %p129
        $region42: #{tpu_custom_call.1} parent=31 // pred_check_branch
          %439 = sbr.rel (%p437) target = $region44
        $region43: #{tpu_custom_call.1} parent=31 // pred_region
          %s441 = ssub.s32 256, 256
          %442 = vsyncadd %s423, %s441
          %s443 = smul.addr %s31, 4
          %s444 = sadd.s32 %s32, %s443
          %s445 = smul.addr %s444, 64
          %s446 = scalar_lea.hbm %s3, %s445
          %s447 = sshll.u32 %s426, 4
          %s448 = int_to_ptr.vmem [resolvable:$true] %s447
          %453 = dma.vmem_to_hbm [thread:$0]  %s448, 256, %s446, %s423, 64, 64, 4
        $region44: #{tpu_custom_call.1} parent=31 // pred_fallthru
          _
        // Predicated region
        $region45: #{tpu_custom_call.1} parent=31 // pred_check
          %p454 = pneg %p157
        $region46: #{tpu_custom_call.1} parent=31 // pred_check_branch
          %456 = sbr.rel (%p454) target = $region48
        $region47: #{tpu_custom_call.1} parent=31 // pred_region
          %s458 = ssub.s32 256, 256
          %459 = vsyncadd %s428, %s458
          %s460 = smul.addr %s31, 4
          %s461 = sadd.s32 %s32, %s460
          %s462 = smul.addr %s461, 64
          %s463 = scalar_lea.hbm %s4, %s462
          %s464 = sshll.u32 %s431, 4
          %s465 = int_to_ptr.vmem [resolvable:$true] %s464
          %470 = dma.vmem_to_hbm [thread:$0]  %s465, 256, %s463, %s428, 64, 64, 4
        $region48: #{tpu_custom_call.1} parent=31 // pred_fallthru
          _
        // Predicated region
        $region49: #{tpu_custom_call.1} parent=31 // pred_check
          %p471 = pneg %p185
        $region50: #{tpu_custom_call.1} parent=31 // pred_check_branch
          %473 = sbr.rel (%p471) target = $region52
        $region51: #{tpu_custom_call.1} parent=31 // pred_region
          %s475 = ssub.s32 256, 256
          %476 = vsyncadd %s433, %s475
          %s477 = smul.addr %s31, 4
          %s478 = sadd.s32 %s32, %s477
          %s479 = smul.addr %s478, 64
          %s480 = scalar_lea.hbm %s5, %s479
          %s481 = sshll.u32 %s436, 4
          %s482 = int_to_ptr.vmem [resolvable:$true] %s481
          %487 = dma.vmem_to_hbm [thread:$0]  %s482, 256, %s480, %s433, 64, 64, 4
        $region52: #{tpu_custom_call.1} parent=31 // pred_fallthru
          _
      $region32: #{tpu_custom_call.1} parent=5 // pred_fallthru
        _
      %p488 = scmp.le.s32.totalorder 2, %s22
      // Predicated region
      $region53: #{tpu_custom_call.1} parent=5 // pred_check
        %p489 = pneg %p488
      $region54: #{tpu_custom_call.1} parent=5 // pred_check_branch
        %491 = sbr.rel (%p489) target = $region56
      $region55: #{tpu_custom_call.1} parent=5 // pred_region
        %s492 = ssub.s32 %s22, 2
        // Predicated region
        $region57: #{tpu_custom_call.1} parent=55 // pred_check
          %p493 = pneg %p135
        $region58: #{tpu_custom_call.1} parent=55 // pred_check_branch
          %495 = sbr.rel (%p493) target = $region60
        $region59: #{tpu_custom_call.1} parent=55 // pred_region
          %s496 = sand.u32 %s120, 1
          %s497 = scalar_lea.sflag [#allocation4], %s496
          %s498 = sand.u32 %s120, 1
          %s499 = smul.addr %s498, 16
          %s500 = scalar_lea.vmem [#allocation7], %s499
          %501 = dma.done %s497, 256
        $region60: #{tpu_custom_call.1} parent=55 // pred_fallthru
          _
        // Predicated region
        $region61: #{tpu_custom_call.1} parent=55 // pred_check
          %p502 = pneg %p163
        $region62: #{tpu_custom_call.1} parent=55 // pred_check_branch
          %504 = sbr.rel (%p502) target = $region64
        $region63: #{tpu_custom_call.1} parent=55 // pred_region
          %s505 = sand.u32 %s28, 1
          %s506 = scalar_lea.sflag [#allocation9], %s505
          %s507 = sand.u32 %s148, 1
          %s508 = smul.addr %s507, 16
          %s509 = scalar_lea.vmem [#allocation8], %s508
          %510 = dma.done %s506, 256
        $region64: #{tpu_custom_call.1} parent=55 // pred_fallthru
          _
        // Predicated region
        $region65: #{tpu_custom_call.1} parent=55 // pred_check
          %p511 = pneg %p191
        $region66: #{tpu_custom_call.1} parent=55 // pred_check_branch
          %513 = sbr.rel (%p511) target = $region68
        $region67: #{tpu_custom_call.1} parent=55 // pred_region
          %s514 = sand.u32 %s28, 1
          %s515 = scalar_lea.sflag [#allocation9], %s514
          %s516 = sand.u32 %s176, 1
          %s517 = smul.addr %s516, 16
          %s518 = scalar_lea.vmem [#allocation10], %s517
          %519 = dma.done %s515, 256
        $region68: #{tpu_custom_call.1} parent=55 // pred_fallthru
          _
      $region56: #{tpu_custom_call.1} parent=5 // pred_fallthru
        _
    $region6: #{tpu_custom_call.1} parent=1 // loop_footer
      %s26 = sadd.s32 1, %s22
    $region7: #{tpu_custom_call.1} parent=1 // loop_footer_branch
      %21 = sbr.rel target = $region3
    $region8: #{tpu_custom_call.1} parent=1 // loop_exit
      _
    %520 = vsyncpa [#allocation3], 1
    %s521 = scalar_lea.sflag [#allocation3], 1
    %522 = vsyncpa %s521, 1
    %523 = vsyncpa [#allocation6], 1
    %524 = vsyncpa [#allocation4], 1
    %s525 = scalar_lea.sflag [#allocation4], 1
    %526 = vsyncpa %s525, 1
    %527 = vsyncpa [#allocation9], 1
    %s528 = scalar_lea.sflag [#allocation9], 1
    %529 = vsyncpa %s528, 1

</llo_original>
